<compile_context>
chip_gen: v7x
topology: tpu7x:2x2x1
jax: 0.10.0
libtpu: 0.0.40
codegen_flags: <defaults>
</compile_context>

<pallas_src>
import jax
import jax.numpy as jnp
from jax.experimental import pallas as pl
from jax.experimental.pallas import tpu as pltpu


def _round_up(x, m):
    return ((x + m - 1) // m) * m


def _decoder_kernel(zt_ref, w1_ref, b1_ref, w2_ref, b2_ref, out_ref):
    """out_t = W2 @ relu(W1 @ z_t + b1) + b2, all tiles VMEM-resident.

    zt_ref : (d_in, TM)    feature-major slab, M on the lane axis
    w1_ref : (nhid, d_in)  PyTorch fc1.weight layout
    b1_ref : (nhid, 1)
    w2_ref : (d_out, nhid) PyTorch fc2.weight layout
    b2_ref : (d_out, 1)
    out_ref: (d_out, TM)   lane-dense output slab
    """
    h = jnp.dot(w1_ref[...], zt_ref[...],
                preferred_element_type=jnp.float32) + b1_ref[...]
    h = jnp.maximum(h, 0.0)                                   # ReLU, (nhid, TM)
    out_ref[...] = (jnp.dot(w2_ref[...], h,
                            preferred_element_type=jnp.float32)
                    + b2_ref[...]).astype(out_ref.dtype)      # (d_out, TM)


def decoder_forward(z, params, *, row_tile=2048, min_pallas_rows=0,
                    input_dtype=jnp.float32):
    """Pallas Decoder forward.

    z: (..., latent_dim) float array.
    params: dict with PyTorch-layout weights
        w1: (nhidden, latent_dim)   b1: (nhidden, 1)
        w2: (obs_dim, nhidden)      b2: (obs_dim, 1)
    Returns: (..., obs_dim) float32.
    """
    w1, b1, w2, b2 = params["w1"], params["b1"], params["w2"], params["b2"]
    nhid, d_in = w1.shape
    d_out = w2.shape[0]
    assert z.shape[-1] == d_in

    lead = z.shape[:-1]
    m = 1
    for s in lead:
        m *= s

    # Tiny-M fallback: XLA fuses the two small GEMMs more cheaply than a
    # pallas_call dispatch.  Off by default so the kernel path is exercised.
    if m < min_pallas_rows:
        zf = z.reshape(m, d_in).astype(jnp.float32)
        h = jnp.maximum(zf @ w1.T + b1[:, 0], 0.0)
        return (h @ w2.T + b2[:, 0]).reshape(*lead, d_out)

    # Feature-major layout: flatten leading dims, put M on the lane axis.
    zt = z.reshape(m, d_in).T.astype(input_dtype)              # (d_in, m)

    # Row (lane) tile: multiple of 256 (fills the 2x256 MXU on v6e/v7x,
    # harmless on v5e), capped by row_tile; pad M up to a tile multiple.
    tm = max(256, min(_round_up(row_tile, 256), _round_up(m, 256)))
    m_pad = _round_up(m, tm)
    if m_pad != m:
        zt = jnp.pad(zt, ((0, 0), (0, m_pad - m)))

    grid = (m_pad // tm,)

    flops = 2 * m_pad * (d_in * nhid + nhid * d_out)
    bytes_accessed = (zt.dtype.itemsize * m_pad * d_in
                      + 4 * m_pad * d_out
                      + w1.dtype.itemsize * (nhid * d_in + d_out * nhid)
                      + 4 * (nhid + d_out))

    out_t = pl.pallas_call(
        _decoder_kernel,
        out_shape=jax.ShapeDtypeStruct((d_out, m_pad), jnp.float32),
        grid=grid,
        in_specs=[
            pl.BlockSpec((d_in, tm), lambda i: (0, i)),      # z slab (lane-tiled)
            pl.BlockSpec((nhid, d_in), lambda i: (0, 0)),    # w1 (resident)
            pl.BlockSpec((nhid, 1), lambda i: (0, 0)),       # b1
            pl.BlockSpec((d_out, nhid), lambda i: (0, 0)),   # w2 (resident)
            pl.BlockSpec((d_out, 1), lambda i: (0, 0)),      # b2
        ],
        out_specs=pl.BlockSpec((d_out, tm), lambda i: (0, i)),
        compiler_params=pltpu.CompilerParams(
            dimension_semantics=("parallel",)),
        cost_estimate=pl.CostEstimate(
            flops=flops, transcendentals=0, bytes_accessed=bytes_accessed),
    )(zt, w1.astype(input_dtype), b1, w2.astype(input_dtype), b2)

    # Drop row padding, restore (..., obs_dim).
    return out_t[:, :m].T.reshape(*lead, d_out)


def init_params(key, latent_dim=4, obs_dim=2, nhidden=20):
    """PyTorch-nn.Linear-style init. Returns kernel-layout params + raw mats."""
    ks = jax.random.split(key, 4)

    def linear(kw, kb, fan_in, fan_out):
        bound = 1.0 / (fan_in ** 0.5)
        w = jax.random.uniform(kw, (fan_out, fan_in), jnp.float32, -bound, bound)
        b = jax.random.uniform(kb, (fan_out,), jnp.float32, -bound, bound)
        return w, b

    w1, b1 = linear(ks[0], ks[1], latent_dim, nhidden)   # fc1: (nhidden, latent_dim)
    w2, b2 = linear(ks[2], ks[3], nhidden, obs_dim)      # fc2: (obs_dim, nhidden)

    params = {
        "w1": w1,                          # (nhidden, latent_dim) — PyTorch layout
        "b1": b1.reshape(nhidden, 1),      # column bias for feature-major kernel
        "w2": w2,                          # (obs_dim, nhidden)
        "b2": b2.reshape(obs_dim, 1),
    }
    return params, (w1, b1, w2, b2)


def reference_forward(z, raw_params):
    """Pure-JAX reference identical to the PyTorch Decoder forward."""
    w1, b1, w2, b2 = raw_params
    h = jnp.maximum(z @ w1.T + b1, 0.0)
    return h @ w2.T + b2


if __name__ == "__main__":
    latent_dim, obs_dim, nhidden = 4, 2, 20   # module defaults
    B, T = 2, 8                               # small latent trajectory batch

    key = jax.random.PRNGKey(0)
    kz, kp = jax.random.split(key)

    params, raw = init_params(kp, latent_dim, obs_dim, nhidden)
    z = jax.random.normal(kz, (B, T, latent_dim), jnp.float32)

    # min_pallas_rows=0 -> force the Pallas path even for this tiny example.
    out = decoder_forward(z, params, min_pallas_rows=0)
    out = jax.block_until_ready(out)

    ref = reference_forward(z, raw)
    assert out.shape == (B, T, obs_dim), out.shape
    assert jnp.allclose(out, ref, atol=1e-5, rtol=1e-5), (out, ref)
    print("KERNEL_OK")
</pallas_src>

<mosaic_0001>
module attributes {stable_mosaic.version = 11 : i64} {
  func.func @_decoder_kernel(%arg0: i32, %arg1: memref<4x256xf32, #tpu.memory_space<vmem>>, %arg2: memref<20x4xf32, #tpu.memory_space<vmem>>, %arg3: memref<20x1xf32, #tpu.memory_space<vmem>>, %arg4: memref<2x20xf32, #tpu.memory_space<vmem>>, %arg5: memref<2x1xf32, #tpu.memory_space<vmem>>, %arg6: memref<2x256xf32, #tpu.memory_space<vmem>>) attributes {dimension_semantics = [#tpu.dimension_semantics<parallel>], iteration_bounds = array<i64: 1>, scalar_prefetch = 0 : i64, scratch_operands = 0 : i64, tpu.core_type = #tpu.core_type<tc>, window_params = [{transform_indices = @transform_0, window_bounds = array<i64: 4, 256>}, {pipeline_mode = #tpu.pipeline_mode<synchronous>, transform_indices = @transform_1, window_bounds = array<i64: 20, 4>}, {pipeline_mode = #tpu.pipeline_mode<synchronous>, transform_indices = @transform_2, window_bounds = array<i64: 20, 1>}, {pipeline_mode = #tpu.pipeline_mode<synchronous>, transform_indices = @transform_3, window_bounds = array<i64: 2, 20>}, {pipeline_mode = #tpu.pipeline_mode<synchronous>, transform_indices = @transform_4, window_bounds = array<i64: 2, 1>}, {transform_indices = @transform_5, window_bounds = array<i64: 2, 256>}]} {
    %c0 = arith.constant 0 : index
    %c0_0 = arith.constant 0 : index
    %0 = vector.load %arg2[%c0, %c0_0] : memref<20x4xf32, #tpu.memory_space<vmem>>, vector<20x4xf32>
    %c0_1 = arith.constant 0 : index
    %c0_2 = arith.constant 0 : index
    %1 = vector.load %arg1[%c0_1, %c0_2] : memref<4x256xf32, #tpu.memory_space<vmem>>, vector<4x256xf32>
    %cst = arith.constant dense<0.000000e+00> : vector<20x256xf32>
    %2 = tpu.matmul %0, %1, %cst {dimension_numbers = #tpu.dot_dimension_numbers<[1], [0], [0], [1], [0, 0, 1, 1], [], []>} : vector<20x4xf32>, vector<4x256xf32>, vector<20x256xf32> -> vector<20x256xf32>
    %c0_3 = arith.constant 0 : index
    %c0_4 = arith.constant 0 : index
    %3 = vector.load %arg3[%c0_3, %c0_4] : memref<20x1xf32, #tpu.memory_space<vmem>>, vector<20x1xf32>
    %4 = vector.broadcast %3 : vector<20x1xf32> to vector<20x256xf32>
    %5 = arith.addf %2, %4 : vector<20x256xf32>
    %cst_5 = arith.constant 0.000000e+00 : f32
    %6 = vector.broadcast %cst_5 : f32 to vector<20x256xf32>
    %7 = arith.maximumf %5, %6 : vector<20x256xf32>
    %c0_6 = arith.constant 0 : index
    %c0_7 = arith.constant 0 : index
    %8 = vector.load %arg4[%c0_6, %c0_7] : memref<2x20xf32, #tpu.memory_space<vmem>>, vector<2x20xf32>
    %cst_8 = arith.constant dense<0.000000e+00> : vector<2x256xf32>
    %9 = tpu.matmul %8, %7, %cst_8 {dimension_numbers = #tpu.dot_dimension_numbers<[1], [0], [0], [1], [0, 0, 1, 1], [], []>} : vector<2x20xf32>, vector<20x256xf32>, vector<2x256xf32> -> vector<2x256xf32>
    %c0_9 = arith.constant 0 : index
    %c0_10 = arith.constant 0 : index
    %10 = vector.load %arg5[%c0_9, %c0_10] : memref<2x1xf32, #tpu.memory_space<vmem>>, vector<2x1xf32>
    %11 = vector.broadcast %10 : vector<2x1xf32> to vector<2x256xf32>
    %12 = arith.addf %9, %11 : vector<2x256xf32>
    %c0_11 = arith.constant 0 : index
    %c0_12 = arith.constant 0 : index
    %13 = vector.load %arg6[%c0_11, %c0_12] : memref<2x256xf32, #tpu.memory_space<vmem>>, vector<2x256xf32>
    tpu.vector_store %arg6[%c0_11, %c0_12], %12 {strides = array<i32>} : memref<2x256xf32, #tpu.memory_space<vmem>>, vector<2x256xf32>,
    return
  }
  func.func @transform_0(%arg0: i32) -> (i32, i32) {
    %c0_i32 = arith.constant 0 : i32
    %c0_i32_0 = arith.constant 0 : i32
    return %c0_i32, %arg0 : i32, i32
  }
  func.func @transform_1(%arg0: i32) -> (i32, i32) {
    %c0_i32 = arith.constant 0 : i32
    %c0_i32_0 = arith.constant 0 : i32
    %c0_i32_1 = arith.constant 0 : i32
    return %c0_i32, %c0_i32_0 : i32, i32
  }
  func.func @transform_2(%arg0: i32) -> (i32, i32) {
    %c0_i32 = arith.constant 0 : i32
    %c0_i32_0 = arith.constant 0 : i32
    %c0_i32_1 = arith.constant 0 : i32
    return %c0_i32, %c0_i32_0 : i32, i32
  }
  func.func @transform_3(%arg0: i32) -> (i32, i32) {
    %c0_i32 = arith.constant 0 : i32
    %c0_i32_0 = arith.constant 0 : i32
    %c0_i32_1 = arith.constant 0 : i32
    return %c0_i32, %c0_i32_0 : i32, i32
  }
  func.func @transform_4(%arg0: i32) -> (i32, i32) {
    %c0_i32 = arith.constant 0 : i32
    %c0_i32_0 = arith.constant 0 : i32
    %c0_i32_1 = arith.constant 0 : i32
    return %c0_i32, %c0_i32_0 : i32, i32
  }
  func.func @transform_5(%arg0: i32) -> (i32, i32) {
    %c0_i32 = arith.constant 0 : i32
    %c0_i32_0 = arith.constant 0 : i32
    return %c0_i32, %arg0 : i32, i32
  }
}

</mosaic_0001>

<llo_original>
// kernel: tpu_custom_call.1
$region0: #{tpu_custom_call.1}
  #allocation0 [shape = 'u32[]', space=smem, size = 0x4, offset = 0x4, fixed_abs, tag = 'smem constant byte address 0x4 - core index']
  #allocation1 [shape = 'u32[144,128]{1,0:T(1,128)}', space=vmem, size = 0x12000, scoped, tag = 'internal scratch']
  %s0 = inlined_call_operand.vmem [shape: f32[4,256], index: 0, kind: input, shape index: {}]
  %s1 = inlined_call_operand.vmem [shape: f32[20,4], index: 1, kind: input, shape index: {}]
  %s2 = inlined_call_operand.vmem [shape: f32[20,1], index: 2, kind: input, shape index: {}]
  %s3 = inlined_call_operand.vmem [shape: f32[2,20], index: 3, kind: input, shape index: {}]
  %s4 = inlined_call_operand.vmem [shape: f32[2,1], index: 4, kind: input, shape index: {}]
  %s5 = inlined_call_operand.hbm [shape: f32[2,256], index: 5, kind: output, shape index: {}]
  %s6 = sld [smem:[#allocation0]]
  $region30: #{tpu_custom_call.1} parent=0
    _
  %s8 = ssub.s32 1, %s6
  %s9 = scalar_select 0, %s8, %s6
  $region1: #{tpu_custom_call.1} parent=0
    #allocation2 [shape = 'u8[2048]{0}', space=vmem, size = 0x800, scoped, tag = 'output window, operand 0, single buffered']
    #allocation3 [shape = 's32[1]{0}', space=sflag, size = 0x4, scoped, tag = 'scoped memory for tpu_custom_call.1']
    %10 = vsyncpa [#allocation3], 0
    // Predicated region
    $region2: #{tpu_custom_call.1} parent=1 // pred_check
      _
    $region3: #{tpu_custom_call.1} parent=1 // pred_check_branch
      %12 = sbr.rel (0) target = $region5
    $region4: #{tpu_custom_call.1} parent=1 // pred_region
      _
    $region5: #{tpu_custom_call.1} parent=1 // pred_fallthru
      _
    // Predicated region
    $region6: #{tpu_custom_call.1} parent=1 // pred_check
      _
    $region7: #{tpu_custom_call.1} parent=1 // pred_check_branch
      %14 = sbr.rel (0) target = $region9
    $region8: #{tpu_custom_call.1} parent=1 // pred_region
      _
    $region9: #{tpu_custom_call.1} parent=1 // pred_fallthru
      _
    // Predicated region
    $region10: #{tpu_custom_call.1} parent=1 // pred_check
      _
    $region11: #{tpu_custom_call.1} parent=1 // pred_check_branch
      %16 = sbr.rel (0) target = $region13
    $region12: #{tpu_custom_call.1} parent=1 // pred_region
      _
    $region13: #{tpu_custom_call.1} parent=1 // pred_fallthru
      _
    // Predicated region
    $region14: #{tpu_custom_call.1} parent=1 // pred_check
      _
    $region15: #{tpu_custom_call.1} parent=1 // pred_check_branch
      %18 = sbr.rel (0) target = $region17
    $region16: #{tpu_custom_call.1} parent=1 // pred_region
      _
    $region17: #{tpu_custom_call.1} parent=1 // pred_fallthru
      _
    // Predicated region
    $region18: #{tpu_custom_call.1} parent=1 // pred_check
      _
    $region19: #{tpu_custom_call.1} parent=1 // pred_check_branch
      %20 = sbr.rel (0) target = $region21
    $region20: #{tpu_custom_call.1} parent=1 // pred_region
      _
    $region21: #{tpu_custom_call.1} parent=1 // pred_fallthru
      _
    %v21 = vld [vmem:[%s1] sm:$0xff]
    %v22 = vld [vmem:[%s1 + $0x8] sm:$0xff]
    %v23 = vld [vmem:[%s1 + $0x10] sm:$0xf]
    %v24 = vld [vmem:[%s0] sm:$0xff]
    %v25 = vld [vmem:[%s2] sm:$0xff]
    %v26 = vld [vmem:[%s2 + $0x8] sm:$0xff]
    %v27 = vld [vmem:[%s2 + $0x10] sm:$0xf]
    %29 = vset.pattern.permute.xlu0 0
    %30 = vperm.xlu0 %29, %v25
    %v31 = vpop.permute.xlu0 %30
    %34 = vset.pattern.permute.xlu0 0
    %35 = vperm.xlu0 %34, %v26
    %v36 = vpop.permute.xlu0 %35
    %39 = vset.pattern.permute.xlu0 0
    %40 = vperm.xlu0 %39, %v27
    %v41 = vpop.permute.xlu0 %40
    %v44 = vcombine.high %v24, %v24
    %vm45 = vcmask 31744
    %v47 = vsel %vm45, %v21, 0
    %v50 = vsel %vm45, %v22, 0
    %v53 = vsel %vm45, %v23, 0
    %vm55 = vcmask 1043456
    %v56 = vsel %vm55, %v24, 0
    %v58 = vsel %vm55, %v44, 0
    %60 = vmatprep.subr.mxu0 %v58
    %61 = vmatpush1.msra.mxu0 %v56
    %62 = vmatprep.subr.mxu0 0.0
    %63 = vmatpush1.msra.mxu0 0.0
    %64 = vmatprep.subr.mxu0 0.0
    %65 = vmatpush1.msra.mxu0 0.0
    %66 = vmatprep.subr.mxu0 0.0
    %67 = vmatpush1.msra.mxu0 0.0
    %68 = vmatprep.subr.mxu0 0.0
    %69 = vmatpush1.msra.mxu0 0.0
    %70 = vmatprep.subr.mxu0 0.0
    %71 = vmatpush1.msra.mxu0 0.0
    %72 = vmatprep.subr.mxu0 0.0
    %73 = vmatpush1.msra.mxu0 0.0
    %74 = vmatprep.subr.mxu0 0.0
    %75 = vmatpush1.msra.mxu0 0.0
    %76 = vmatprep.subr.mxu0 0.0
    %77 = vmatpush1.msra.mxu0 0.0
    %78 = vmatprep.subr.mxu0 0.0
    %79 = vmatpush1.msra.mxu0 0.0
    %80 = vmatprep.subr.mxu0 0.0
    %81 = vmatpush1.msra.mxu0 0.0
    %82 = vmatprep.subr.mxu0 0.0
    %83 = vmatpush1.msra.mxu0 0.0
    %84 = vmatprep.subr.mxu0 0.0
    %85 = vmatpush1.msra.mxu0 0.0
    %86 = vmatprep.subr.mxu0 0.0
    %87 = vmatpush1.msra.mxu0 0.0
    %88 = vmatprep.subr.mxu0 0.0
    %89 = vmatpush1.msra.mxu0 0.0
    %90 = vmatprep.subr.mxu0 0.0
    %91 = vmatpush1.msra.mxu0 0.0
    %92 = vmatprep.subr.mxu0 0.0
    %93 = vmatpush1.msra.mxu0 0.0
    %94 = vmatprep.subr.mxu0 0.0
    %95 = vmatpush1.msra.mxu0 0.0
    %96 = vmatprep.subr.mxu0 0.0
    %97 = vmatpush1.msra.mxu0 0.0
    %98 = vmatprep.subr.mxu0 0.0
    %99 = vmatpush1.msra.mxu0 0.0
    %100 = vmatprep.subr.mxu0 0.0
    %101 = vmatpush1.msra.mxu0 0.0
    %102 = vmatprep.subr.mxu0 0.0
    %103 = vmatpush1.msra.mxu0 0.0
    %104 = vmatprep.subr.mxu0 0.0
    %105 = vmatpush1.msra.mxu0 0.0
    %106 = vmatprep.subr.mxu0 0.0
    %107 = vmatpush1.msra.mxu0 0.0
    %108 = vmatprep.subr.mxu0 0.0
    %109 = vmatpush1.msra.mxu0 0.0
    %110 = vmatprep.subr.mxu0 0.0
    %111 = vmatpush1.msra.mxu0 0.0
    %112 = vmatprep.subr.mxu0 0.0
    %113 = vmatpush1.msra.mxu0 0.0
    %114 = vmatprep.subr.mxu0 0.0
    %115 = vmatpush1.msra.mxu0 0.0
    %116 = vmatprep.subr.mxu0 0.0
    %117 = vmatpush1.msra.mxu0 0.0
    %118 = vmatprep.subr.mxu0 0.0
    %119 = vmatpush1.msra.mxu0 0.0
    %120 = vmatprep.subr.mxu0 0.0
    %121 = vmatpush1.msra.mxu0 0.0
    %122 = vmatprep.subr.mxu0 0.0
    %123 = vmatpush1.msra.mxu0 0.0
    %124 = vmatprep.mubr.f32.mxu0 0.0
    %125 = vmatmul.mubr.f32.gmra.mrb[0].mxu0 %v47
    %v126 = vpop.f32.mrb[0].mxu0
    %v127 = vadd.f32 %v31, %v126
    %v128 = vpop.f32.mrb[0].mxu0
    %v129 = vadd.f32 %v31, %v128
    %130 = vmatprep.mubr.f32.mxu0 0.0
    %131 = vmatmul.mubr.f32.gmra.mrb[0].mxu0 %v50
    %v132 = vpop.f32.mrb[0].mxu0
    %v133 = vadd.f32 %v36, %v132
    %v134 = vpop.f32.mrb[0].mxu0
    %v135 = vadd.f32 %v36, %v134
    %136 = vmatprep.mubr.f32.mxu0 0.0
    %137 = vmatmul.mubr.f32.gmra.mrb[0].mxu0 %v53
    %v138 = vpop.f32.mrb[0].mxu0
    %v139 = vadd.f32 %v41, %v138
    %v140 = vpop.f32.mrb[0].mxu0
    %v141 = vadd.f32 %v41, %v140
    %142 = vdwg.mxu0
    %v143 = vmax.f32 %v127, 0.0
    %v144 = vmax.f32 %v129, 0.0
    %v145 = vmax.f32 %v133, 0.0
    %v146 = vmax.f32 %v135, 0.0
    %v147 = vmax.f32 %v139, 0.0
    %v148 = vmax.f32 %v141, 0.0
    %v149 = vld [vmem:[%s3] sm:$0x3]
    %v150 = vld [vmem:[%s4] sm:$0x3]
    %152 = vset.pattern.permute.xlu0 0
    %153 = vperm.xlu0 %152, %v150
    %v154 = vpop.permute.xlu0 %153
    %vm156 = vcmask 162816
    %v158 = vsel %vm156, %v149, 0
    %v161 = vsel %vm55, %v147, 0
    %v164 = vsel %vm55, %v148, 0
    %166 = vmatprep.subr.mxu0 %v144
    %167 = vmatpush1.msra.mxu0 %v143
    %168 = vmatprep.subr.mxu0 %v146
    %169 = vmatpush1.msra.mxu0 %v145
    %170 = vmatprep.subr.mxu0 %v164
    %171 = vmatpush1.msra.mxu0 %v161
    %172 = vmatprep.subr.mxu0 0.0
    %173 = vmatpush1.msra.mxu0 0.0
    %174 = vmatprep.subr.mxu0 0.0
    %175 = vmatpush1.msra.mxu0 0.0
    %176 = vmatprep.subr.mxu0 0.0
    %177 = vmatpush1.msra.mxu0 0.0
    %178 = vmatprep.subr.mxu0 0.0
    %179 = vmatpush1.msra.mxu0 0.0
    %180 = vmatprep.subr.mxu0 0.0
    %181 = vmatpush1.msra.mxu0 0.0
    %182 = vmatprep.subr.mxu0 0.0
    %183 = vmatpush1.msra.mxu0 0.0
    %184 = vmatprep.subr.mxu0 0.0
    %185 = vmatpush1.msra.mxu0 0.0
    %186 = vmatprep.subr.mxu0 0.0
    %187 = vmatpush1.msra.mxu0 0.0
    %188 = vmatprep.subr.mxu0 0.0
    %189 = vmatpush1.msra.mxu0 0.0
    %190 = vmatprep.subr.mxu0 0.0
    %191 = vmatpush1.msra.mxu0 0.0
    %192 = vmatprep.subr.mxu0 0.0
    %193 = vmatpush1.msra.mxu0 0.0
    %194 = vmatprep.subr.mxu0 0.0
    %195 = vmatpush1.msra.mxu0 0.0
    %196 = vmatprep.subr.mxu0 0.0
    %197 = vmatpush1.msra.mxu0 0.0
    %198 = vmatprep.subr.mxu0 0.0
    %199 = vmatpush1.msra.mxu0 0.0
    %200 = vmatprep.subr.mxu0 0.0
    %201 = vmatpush1.msra.mxu0 0.0
    %202 = vmatprep.subr.mxu0 0.0
    %203 = vmatpush1.msra.mxu0 0.0
    %204 = vmatprep.subr.mxu0 0.0
    %205 = vmatpush1.msra.mxu0 0.0
    %206 = vmatprep.subr.mxu0 0.0
    %207 = vmatpush1.msra.mxu0 0.0
    %208 = vmatprep.subr.mxu0 0.0
    %209 = vmatpush1.msra.mxu0 0.0
    %210 = vmatprep.subr.mxu0 0.0
    %211 = vmatpush1.msra.mxu0 0.0
    %212 = vmatprep.subr.mxu0 0.0
    %213 = vmatpush1.msra.mxu0 0.0
    %214 = vmatprep.subr.mxu0 0.0
    %215 = vmatpush1.msra.mxu0 0.0
    %216 = vmatprep.subr.mxu0 0.0
    %217 = vmatpush1.msra.mxu0 0.0
    %218 = vmatprep.subr.mxu0 0.0
    %219 = vmatpush1.msra.mxu0 0.0
    %220 = vmatprep.subr.mxu0 0.0
    %221 = vmatpush1.msra.mxu0 0.0
    %222 = vmatprep.subr.mxu0 0.0
    %223 = vmatpush1.msra.mxu0 0.0
    %224 = vmatprep.subr.mxu0 0.0
    %225 = vmatpush1.msra.mxu0 0.0
    %226 = vmatprep.subr.mxu0 0.0
    %227 = vmatpush1.msra.mxu0 0.0
    %228 = vmatprep.subr.mxu0 0.0
    %229 = vmatpush1.msra.mxu0 0.0
    %230 = vmatprep.mubr.f32.mxu0 0.0
    %231 = vmatmul.mubr.f32.gmra.mrb[0].mxu0 %v158
    %v232 = vpop.f32.mrb[0].mxu0
    %v233 = vadd.f32 %v154, %v232
    %v234 = vpop.f32.mrb[0].mxu0
    %v235 = vadd.f32 %v154, %v234
    %236 = vdwg.mxu0
    %v239 = vcombine.low %v233, %v235
    %v241 = vunpack.c.l.s4 1983009808
    %v242 = vunpack.c.0.s8 %v241
    %v243 = vlaneseq
    %v244 = vshrl.u32 %v243, 7
    %v245 = vsub.s32 %v242, %v244
    %v246 = vrot.slane %v239, %v245
    %248 = vst [vmem:[#allocation2] sm:$0xf] %v246
    // Predicated region
    $region22: #{tpu_custom_call.1} parent=1 // pred_check
      _
    $region23: #{tpu_custom_call.1} parent=1 // pred_check_branch
      %250 = sbr.rel (0) target = $region25
    $region24: #{tpu_custom_call.1} parent=1 // pred_region
      %s252 = ssub.s32 64, 64
      %253 = vsyncadd [#allocation3], %s252
      %s255 = sshll.u32 [#allocation2], 4
      %s256 = int_to_ptr.vmem [resolvable:$true] %s255
      %258 = dma.vmem_to_hbm [thread:$0]  %s256, 64, %s5, [#allocation3]
    $region25: #{tpu_custom_call.1} parent=1 // pred_fallthru
      _
    // Predicated region
    $region26: #{tpu_custom_call.1} parent=1 // pred_check
      _
    $region27: #{tpu_custom_call.1} parent=1 // pred_check_branch
      %260 = sbr.rel (0) target = $region29
    $region28: #{tpu_custom_call.1} parent=1 // pred_region
      %261 = dma.done [#allocation3], 64
    $region29: #{tpu_custom_call.1} parent=1 // pred_fallthru
      _
    %262 = vsyncpa [#allocation3], 1

</llo_original>
